<compile_context>
chip_gen: v7x
topology: tpu7x:2x2x1
jax: 0.10.0
libtpu: 0.0.40
codegen_flags: <defaults>
</compile_context>

<pallas_src>
import functools

import jax
import jax.numpy as jnp
from jax.experimental import pallas as pl
from jax.experimental.pallas import tpu as pltpu


def agcn_kernel(supports_ref, x2_ref, w_ref, b_ref, out_ref, *,
                cheb_k, batch, dim_in):
    """Single-invocation kernel: all operands resident in VMEM.

    supports_ref: (S, Np, Np)
    x2_ref:       (Np, B*Cin)    -- batch folded into lanes
    w_ref:        (S*cheb_k*Cin, Cout)
    b_ref:        (1, Cout)
    out_ref:      (B*Np, Cout)
    """
    S = supports_ref.shape[0]
    K = cheb_k
    B = batch
    Cin = dim_in
    acc = jnp.float32

    x2 = x2_ref[...]                               # (Np, B*Cin)

    # Chebyshev recurrence applied directly to the aggregated features:
    #   G_1 = A @ X,  G_k = 2*A @ G_{k-1} - G_{k-2},  with G_0 = X (identity term).
    # One (Np,Np)@(Np,B*Cin) MXU matmul per term; f32 accumulation throughout.
    g_terms = []                                   # per support: [G_1 .. G_{K-1}]
    for s in range(S):
        A = supports_ref[s]                        # (Np, Np)
        g_prev = x2.astype(acc)
        g_cur = jnp.dot(A, x2, preferred_element_type=jnp.float32)
        terms = [g_cur]
        for _k in range(2, K):
            g_next = 2.0 * jnp.dot(A, g_cur,
                                   preferred_element_type=jnp.float32) - g_prev
            g_prev, g_cur = g_cur, g_next
            terms.append(g_next)
        g_terms.append(terms)

    # Merge the identity-term weight slices of all supports (k==0 terms all see x),
    # and gather the k>=1 slices in (support-major, k-minor) order to match the
    # reference concatenation.
    w_id = w_ref[0:Cin, :].astype(acc)
    for s in range(1, S):
        base = s * K * Cin
        w_id = w_id + w_ref[base:base + Cin, :].astype(acc)
    w_slices = [w_id]
    for s in range(S):
        for k in range(1, K):
            t = s * K + k
            w_slices.append(w_ref[t * Cin:(t + 1) * Cin, :].astype(acc))
    w_eff = jnp.concatenate(w_slices, axis=0)      # (D_eff, Cout)

    # Assemble the fused feature slab (B*Np, D_eff): rows are (batch, node),
    # columns follow the weight ordering above.
    feat_rows = []
    for b in range(B):
        lo, hi = b * Cin, (b + 1) * Cin
        cols = [x2[:, lo:hi].astype(acc)]
        for s in range(S):
            for g in g_terms[s]:
                cols.append(g[:, lo:hi])
        feat_rows.append(jnp.concatenate(cols, axis=1))    # (Np, D_eff)
    feat = jnp.concatenate(feat_rows, axis=0)              # (B*Np, D_eff)

    # One deep-K projection + hoisted bias broadcast, single lane-dense store.
    out = jnp.dot(feat, w_eff, preferred_element_type=jnp.float32)
    out = out + b_ref[0, :].astype(acc)[None, :]
    out_ref[...] = out.astype(out_ref.dtype)


def agcn_forward(x, supports, weights, bias, cheb_k):
    """x: (B, N, Cin); supports: list of (N, N); weights: (2*cheb_k*Cin, Cout)."""
    assert cheb_k >= 2, "AGCN weights shape implies cheb_k >= 2"
    B, N, Cin = x.shape
    Cout = weights.shape[1]
    S = len(supports)
    assert weights.shape[0] == S * cheb_k * Cin

    # Pad node count to a sublane multiple; zero padding is exact for this op.
    Np = max(8, ((N + 7) // 8) * 8)
    sup = jnp.stack(supports, axis=0)                      # (S, N, N)
    if Np != N:
        sup = jnp.pad(sup, ((0, 0), (0, Np - N), (0, Np - N)))

    # Fold batch into the lane dimension: (B, N, Cin) -> (Np, B*Cin).
    x2 = jnp.transpose(x, (1, 0, 2)).reshape(N, B * Cin)
    if Np != N:
        x2 = jnp.pad(x2, ((0, Np - N), (0, 0)))

    bias2d = bias.reshape(1, Cout)

    kern = functools.partial(agcn_kernel, cheb_k=cheb_k, batch=B, dim_in=Cin)
    out2 = pl.pallas_call(
        kern,
        out_shape=jax.ShapeDtypeStruct((B * Np, Cout), x.dtype),
        grid=(1,),
        in_specs=[
            pl.BlockSpec(sup.shape, lambda i: (0, 0, 0)),
            pl.BlockSpec(x2.shape, lambda i: (0, 0)),
            pl.BlockSpec(weights.shape, lambda i: (0, 0)),
            pl.BlockSpec((1, Cout), lambda i: (0, 0)),
        ],
        out_specs=pl.BlockSpec((B * Np, Cout), lambda i: (0, 0)),
        compiler_params=pltpu.CompilerParams(
            dimension_semantics=("arbitrary",)),
    )(sup, x2, weights, bias2d)

    return out2.reshape(B, Np, Cout)[:, :N, :]


def agcn_ref(x, supports, weights, bias, cheb_k):
    """Pure-JAX reference, a direct transcription of the PyTorch forward."""
    N = supports[0].shape[0]
    support_set = []
    for s in supports:
        ks = [jnp.eye(N, dtype=x.dtype), s]
        for _ in range(2, cheb_k):
            ks.append(2.0 * (s @ ks[-1]) - ks[-2])
        support_set.extend(ks)
    x_g = jnp.concatenate(
        [jnp.einsum('nm,bmc->bnc', s, x) for s in support_set], axis=-1)
    return jnp.einsum('bni,io->bno', x_g, weights) + bias


if __name__ == "__main__":
    # Small shapes consistent with the module.
    B, N, Cin, Cout, cheb_k = 2, 16, 4, 32, 3
    n_supports = 2

    key = jax.random.PRNGKey(0)
    k_x, k_s0, k_s1, k_w = jax.random.split(key, 4)

    x = jax.random.normal(k_x, (B, N, Cin), dtype=jnp.float32)
    # Row-normalized random adjacencies as supports (deterministic).
    s0 = jax.nn.softmax(jax.random.normal(k_s0, (N, N), dtype=jnp.float32), axis=-1)
    s1 = jax.nn.softmax(jax.random.normal(k_s1, (N, N), dtype=jnp.float32), axis=-1)
    supports = [s0, s1]

    # Parameters: xavier_normal_ for weights, zeros for bias (deterministic).
    fan_in = n_supports * cheb_k * Cin
    fan_out = Cout
    xavier_std = (2.0 / (fan_in + fan_out)) ** 0.5
    weights = xavier_std * jax.random.normal(k_w, (fan_in, fan_out), dtype=jnp.float32)
    bias = jnp.zeros((Cout,), dtype=jnp.float32)

    out = agcn_forward(x, supports, weights, bias, cheb_k)
    out = jax.block_until_ready(out)

    ref = agcn_ref(x, supports, weights, bias, cheb_k)
    assert out.shape == (B, N, Cout)
    assert jnp.allclose(out, ref, atol=1e-4, rtol=1e-4), "mismatch vs reference"

    print("KERNEL_OK")
</pallas_src>

<mosaic_0001>
module attributes {stable_mosaic.version = 11 : i64} {
  func.func @agcn_kernel(%arg0: i32, %arg1: memref<2x16x16xf32, #tpu.memory_space<vmem>>, %arg2: memref<16x8xf32, #tpu.memory_space<vmem>>, %arg3: memref<24x32xf32, #tpu.memory_space<vmem>>, %arg4: memref<1x32xf32, #tpu.memory_space<vmem>>, %arg5: memref<32x32xf32, #tpu.memory_space<vmem>>) attributes {dimension_semantics = [#tpu.dimension_semantics<arbitrary>], iteration_bounds = array<i64: 1>, scalar_prefetch = 0 : i64, scratch_operands = 0 : i64, tpu.core_type = #tpu.core_type<tc>, window_params = [{pipeline_mode = #tpu.pipeline_mode<synchronous>, transform_indices = @transform_0, window_bounds = array<i64: 2, 16, 16>}, {pipeline_mode = #tpu.pipeline_mode<synchronous>, transform_indices = @transform_1, window_bounds = array<i64: 16, 8>}, {pipeline_mode = #tpu.pipeline_mode<synchronous>, transform_indices = @transform_2, window_bounds = array<i64: 24, 32>}, {pipeline_mode = #tpu.pipeline_mode<synchronous>, transform_indices = @transform_3, window_bounds = array<i64: 1, 32>}, {pipeline_mode = #tpu.pipeline_mode<synchronous>, transform_indices = @transform_4, window_bounds = array<i64: 32, 32>}]} {
    %c0 = arith.constant 0 : index
    %c0_0 = arith.constant 0 : index
    %0 = vector.load %arg2[%c0, %c0_0] : memref<16x8xf32, #tpu.memory_space<vmem>>, vector<16x8xf32>
    %c0_1 = arith.constant 0 : index
    %c0_2 = arith.constant 0 : index
    %c0_3 = arith.constant 0 : index
    %1 = vector.load %arg1[%c0_1, %c0_2, %c0_3] : memref<2x16x16xf32, #tpu.memory_space<vmem>>, vector<1x16x16xf32>
    %2 = vector.shape_cast %1 : vector<1x16x16xf32> to vector<16x16xf32>
    %cst = arith.constant dense<0.000000e+00> : vector<16x8xf32>
    %3 = tpu.matmul %2, %0, %cst {dimension_numbers = #tpu.dot_dimension_numbers<[1], [0], [0], [1], [0, 0, 1, 1], [], []>} : vector<16x16xf32>, vector<16x8xf32>, vector<16x8xf32> -> vector<16x8xf32>
    %cst_4 = arith.constant dense<0.000000e+00> : vector<16x8xf32>
    %4 = tpu.matmul %2, %3, %cst_4 {dimension_numbers = #tpu.dot_dimension_numbers<[1], [0], [0], [1], [0, 0, 1, 1], [], []>} : vector<16x16xf32>, vector<16x8xf32>, vector<16x8xf32> -> vector<16x8xf32>
    %cst_5 = arith.constant 2.000000e+00 : f32
    %5 = vector.broadcast %cst_5 : f32 to vector<16x8xf32>
    %6 = arith.mulf %5, %4 : vector<16x8xf32>
    %7 = arith.subf %6, %0 : vector<16x8xf32>
    %c1 = arith.constant 1 : index
    %c0_6 = arith.constant 0 : index
    %c0_7 = arith.constant 0 : index
    %8 = vector.load %arg1[%c1, %c0_6, %c0_7] : memref<2x16x16xf32, #tpu.memory_space<vmem>>, vector<1x16x16xf32>
    %9 = vector.shape_cast %8 : vector<1x16x16xf32> to vector<16x16xf32>
    %cst_8 = arith.constant dense<0.000000e+00> : vector<16x8xf32>
    %10 = tpu.matmul %9, %0, %cst_8 {dimension_numbers = #tpu.dot_dimension_numbers<[1], [0], [0], [1], [0, 0, 1, 1], [], []>} : vector<16x16xf32>, vector<16x8xf32>, vector<16x8xf32> -> vector<16x8xf32>
    %cst_9 = arith.constant dense<0.000000e+00> : vector<16x8xf32>
    %11 = tpu.matmul %9, %10, %cst_9 {dimension_numbers = #tpu.dot_dimension_numbers<[1], [0], [0], [1], [0, 0, 1, 1], [], []>} : vector<16x16xf32>, vector<16x8xf32>, vector<16x8xf32> -> vector<16x8xf32>
    %cst_10 = arith.constant 2.000000e+00 : f32
    %12 = vector.broadcast %cst_10 : f32 to vector<16x8xf32>
    %13 = arith.mulf %12, %11 : vector<16x8xf32>
    %14 = arith.subf %13, %0 : vector<16x8xf32>
    %c0_11 = arith.constant 0 : index
    %c0_12 = arith.constant 0 : index
    %15 = vector.load %arg3[%c0_11, %c0_12] : memref<24x32xf32, #tpu.memory_space<vmem>>, vector<4x32xf32>
    %c12 = arith.constant 12 : index
    %c0_13 = arith.constant 0 : index
    %16 = vector.load %arg3[%c12, %c0_13] : memref<24x32xf32, #tpu.memory_space<vmem>>, vector<4x32xf32>
    %17 = arith.addf %15, %16 : vector<4x32xf32>
    %c4 = arith.constant 4 : index
    %c0_14 = arith.constant 0 : index
    %18 = vector.load %arg3[%c4, %c0_14] : memref<24x32xf32, #tpu.memory_space<vmem>>, vector<4x32xf32>
    %c8 = arith.constant 8 : index
    %c0_15 = arith.constant 0 : index
    %19 = vector.load %arg3[%c8, %c0_15] : memref<24x32xf32, #tpu.memory_space<vmem>>, vector<4x32xf32>
    %c16 = arith.constant 16 : index
    %c0_16 = arith.constant 0 : index
    %20 = vector.load %arg3[%c16, %c0_16] : memref<24x32xf32, #tpu.memory_space<vmem>>, vector<4x32xf32>
    %c20 = arith.constant 20 : index
    %c0_17 = arith.constant 0 : index
    %21 = vector.load %arg3[%c20, %c0_17] : memref<24x32xf32, #tpu.memory_space<vmem>>, vector<4x32xf32>
    %22 = tpu.concatenate %17, %18, %19, %20, %21 in 0 : vector<4x32xf32>, vector<4x32xf32>, vector<4x32xf32>, vector<4x32xf32>, vector<4x32xf32> -> vector<20x32xf32>
    %23 = vector.extract_strided_slice %0 {offsets = [0, 0], sizes = [16, 4], strides = [1, 1]} : vector<16x8xf32> to vector<16x4xf32>
    %24 = vector.extract_strided_slice %3 {offsets = [0, 0], sizes = [16, 4], strides = [1, 1]} : vector<16x8xf32> to vector<16x4xf32>
    %25 = vector.extract_strided_slice %7 {offsets = [0, 0], sizes = [16, 4], strides = [1, 1]} : vector<16x8xf32> to vector<16x4xf32>
    %26 = vector.extract_strided_slice %10 {offsets = [0, 0], sizes = [16, 4], strides = [1, 1]} : vector<16x8xf32> to vector<16x4xf32>
    %27 = vector.extract_strided_slice %14 {offsets = [0, 0], sizes = [16, 4], strides = [1, 1]} : vector<16x8xf32> to vector<16x4xf32>
    %28 = tpu.concatenate %23, %24, %25, %26, %27 in 1 : vector<16x4xf32>, vector<16x4xf32>, vector<16x4xf32>, vector<16x4xf32>, vector<16x4xf32> -> vector<16x20xf32>
    %29 = vector.extract_strided_slice %0 {offsets = [0, 4], sizes = [16, 4], strides = [1, 1]} : vector<16x8xf32> to vector<16x4xf32>
    %30 = vector.extract_strided_slice %3 {offsets = [0, 4], sizes = [16, 4], strides = [1, 1]} : vector<16x8xf32> to vector<16x4xf32>
    %31 = vector.extract_strided_slice %7 {offsets = [0, 4], sizes = [16, 4], strides = [1, 1]} : vector<16x8xf32> to vector<16x4xf32>
    %32 = vector.extract_strided_slice %10 {offsets = [0, 4], sizes = [16, 4], strides = [1, 1]} : vector<16x8xf32> to vector<16x4xf32>
    %33 = vector.extract_strided_slice %14 {offsets = [0, 4], sizes = [16, 4], strides = [1, 1]} : vector<16x8xf32> to vector<16x4xf32>
    %34 = tpu.concatenate %29, %30, %31, %32, %33 in 1 : vector<16x4xf32>, vector<16x4xf32>, vector<16x4xf32>, vector<16x4xf32>, vector<16x4xf32> -> vector<16x20xf32>
    %35 = tpu.concatenate %28, %34 in 0 : vector<16x20xf32>, vector<16x20xf32> -> vector<32x20xf32>
    %cst_18 = arith.constant dense<0.000000e+00> : vector<32x32xf32>
    %36 = tpu.matmul %35, %22, %cst_18 {dimension_numbers = #tpu.dot_dimension_numbers<[1], [0], [0], [1], [0, 0, 1, 1], [], []>} : vector<32x20xf32>, vector<20x32xf32>, vector<32x32xf32> -> vector<32x32xf32>
    %c0_19 = arith.constant 0 : index
    %c0_20 = arith.constant 0 : index
    %37 = vector.load %arg4[%c0_19, %c0_20] : memref<1x32xf32, #tpu.memory_space<vmem>>, vector<1x32xf32>
    %38 = vector.shape_cast %37 : vector<1x32xf32> to vector<32xf32>
    %39 = vector.shape_cast %38 : vector<32xf32> to vector<1x32xf32>
    %40 = vector.broadcast %39 : vector<1x32xf32> to vector<32x32xf32>
    %41 = arith.addf %36, %40 : vector<32x32xf32>
    %c0_21 = arith.constant 0 : index
    %c0_22 = arith.constant 0 : index
    %42 = vector.load %arg5[%c0_21, %c0_22] : memref<32x32xf32, #tpu.memory_space<vmem>>, vector<32x32xf32>
    tpu.vector_store %arg5[%c0_21, %c0_22], %41 {strides = array<i32>} : memref<32x32xf32, #tpu.memory_space<vmem>>, vector<32x32xf32>,
    return
  }
  func.func @transform_0(%arg0: i32) -> (i32, i32, i32) {
    %c0_i32 = arith.constant 0 : i32
    %c0_i32_0 = arith.constant 0 : i32
    %c0_i32_1 = arith.constant 0 : i32
    %c0_i32_2 = arith.constant 0 : i32
    return %c0_i32, %c0_i32_0, %c0_i32_1 : i32, i32, i32
  }
  func.func @transform_1(%arg0: i32) -> (i32, i32) {
    %c0_i32 = arith.constant 0 : i32
    %c0_i32_0 = arith.constant 0 : i32
    %c0_i32_1 = arith.constant 0 : i32
    return %c0_i32, %c0_i32_0 : i32, i32
  }
  func.func @transform_2(%arg0: i32) -> (i32, i32) {
    %c0_i32 = arith.constant 0 : i32
    %c0_i32_0 = arith.constant 0 : i32
    %c0_i32_1 = arith.constant 0 : i32
    return %c0_i32, %c0_i32_0 : i32, i32
  }
  func.func @transform_3(%arg0: i32) -> (i32, i32) {
    %c0_i32 = arith.constant 0 : i32
    %c0_i32_0 = arith.constant 0 : i32
    %c0_i32_1 = arith.constant 0 : i32
    return %c0_i32, %c0_i32_0 : i32, i32
  }
  func.func @transform_4(%arg0: i32) -> (i32, i32) {
    %c0_i32 = arith.constant 0 : i32
    %c0_i32_0 = arith.constant 0 : i32
    %c0_i32_1 = arith.constant 0 : i32
    return %c0_i32, %c0_i32_0 : i32, i32
  }
}

</mosaic_0001>

<llo_original>
// kernel: tpu_custom_call.1
$region0: #{tpu_custom_call.1}
  #allocation0 [shape = 'u32[]', space=smem, size = 0x4, offset = 0x4, fixed_abs, tag = 'smem constant byte address 0x4 - core index']
  #allocation1 [shape = 'u32[144,128]{1,0:T(1,128)}', space=vmem, size = 0x12000, scoped, tag = 'internal scratch']
  %s0 = inlined_call_operand.hbm [shape: f32[2,16,16], index: 0, kind: input, shape index: {}]
  %s1 = inlined_call_operand.vmem [shape: f32[16,8], index: 1, kind: input, shape index: {}]
  %s2 = inlined_call_operand.vmem [shape: f32[24,32], index: 2, kind: input, shape index: {}]
  %s3 = inlined_call_operand.vmem [shape: f32[1,32], index: 3, kind: input, shape index: {}]
  %s4 = inlined_call_operand.hbm [shape: f32[32,32], index: 4, kind: output, shape index: {}]
  %s5 = sld [smem:[#allocation0]]
  $region30: #{tpu_custom_call.1} parent=0
    _
  %s7 = ssub.s32 1, %s5
  %s8 = scalar_select 0, %s7, %s5
  $region1: #{tpu_custom_call.1} parent=0
    #allocation2 [shape = 'u8[16384]{0}', space=vmem, size = 0x4000, scoped, tag = 'input window, operand 0, single buffered']
    #allocation3 [shape = 's32[1]{0}', space=sflag, size = 0x4, scoped, tag = 'scoped memory for tpu_custom_call.1']
    #allocation4 [shape = 's32[1]{0}', space=sflag, size = 0x4, scoped, tag = 'scoped memory for tpu_custom_call.1']
    #allocation5 [shape = 'u8[16384]{0}', space=vmem, size = 0x4000, scoped, tag = 'output window, operand 0, single buffered']
    %9 = vsyncpa [#allocation3], 0
    %10 = vsyncpa [#allocation4], 0
    // Predicated region
    $region2: #{tpu_custom_call.1} parent=1 // pred_check
      _
    $region3: #{tpu_custom_call.1} parent=1 // pred_check_branch
      %12 = sbr.rel (0) target = $region5
    $region4: #{tpu_custom_call.1} parent=1 // pred_region
      %s14 = ssub.s32 512, 512
      %15 = vsyncadd [#allocation3], %s14
      %s16 = sshll.u32 [#allocation2], 4
      %s17 = int_to_ptr.vmem [resolvable:$true] %s16
      %22 = dma.hbm_to_vmem [thread:$0]  %s0, 512, %s17, [#allocation3], 128, 128, 8
    $region5: #{tpu_custom_call.1} parent=1 // pred_fallthru
      _
    // Predicated region
    $region6: #{tpu_custom_call.1} parent=1 // pred_check
      _
    $region7: #{tpu_custom_call.1} parent=1 // pred_check_branch
      %24 = sbr.rel (0) target = $region9
    $region8: #{tpu_custom_call.1} parent=1 // pred_region
      _
    $region9: #{tpu_custom_call.1} parent=1 // pred_fallthru
      _
    // Predicated region
    $region10: #{tpu_custom_call.1} parent=1 // pred_check
      _
    $region11: #{tpu_custom_call.1} parent=1 // pred_check_branch
      %26 = sbr.rel (0) target = $region13
    $region12: #{tpu_custom_call.1} parent=1 // pred_region
      _
    $region13: #{tpu_custom_call.1} parent=1 // pred_fallthru
      _
    // Predicated region
    $region14: #{tpu_custom_call.1} parent=1 // pred_check
      _
    $region15: #{tpu_custom_call.1} parent=1 // pred_check_branch
      %28 = sbr.rel (0) target = $region17
    $region16: #{tpu_custom_call.1} parent=1 // pred_region
      _
    $region17: #{tpu_custom_call.1} parent=1 // pred_fallthru
      _
    // Predicated region
    $region18: #{tpu_custom_call.1} parent=1 // pred_check
      _
    $region19: #{tpu_custom_call.1} parent=1 // pred_check_branch
      %30 = sbr.rel (0) target = $region21
    $region20: #{tpu_custom_call.1} parent=1 // pred_region
      %31 = dma.done [#allocation3], 512
    $region21: #{tpu_custom_call.1} parent=1 // pred_fallthru
      _
    %v32 = vld [vmem:[%s1] sm:$0xff]
    %v33 = vld [vmem:[%s1 + $0x8] sm:$0xff]
    %v34 = vld [vmem:[#allocation2] sm:$0xff]
    %v35 = vld [vmem:[#allocation2 + $0x8] sm:$0xff]
    %vm36 = vcmask 130048
    %v38 = vsel %vm36, %v34, 0
    %v41 = vsel %vm36, %v35, 0
    %43 = vmatprep.subr.mxu0 0.0
    %44 = vmatpush1.msra.mxu0 %v32
    %45 = vmatprep.subr.mxu0 0.0
    %46 = vmatpush1.msra.mxu0 %v33
    %47 = vmatprep.subr.mxu0 0.0
    %48 = vmatpush1.msra.mxu0 0.0
    %49 = vmatprep.subr.mxu0 0.0
    %50 = vmatpush1.msra.mxu0 0.0
    %51 = vmatprep.subr.mxu0 0.0
    %52 = vmatpush1.msra.mxu0 0.0
    %53 = vmatprep.subr.mxu0 0.0
    %54 = vmatpush1.msra.mxu0 0.0
    %55 = vmatprep.subr.mxu0 0.0
    %56 = vmatpush1.msra.mxu0 0.0
    %57 = vmatprep.subr.mxu0 0.0
    %58 = vmatpush1.msra.mxu0 0.0
    %59 = vmatprep.subr.mxu0 0.0
    %60 = vmatpush1.msra.mxu0 0.0
    %61 = vmatprep.subr.mxu0 0.0
    %62 = vmatpush1.msra.mxu0 0.0
    %63 = vmatprep.subr.mxu0 0.0
    %64 = vmatpush1.msra.mxu0 0.0
    %65 = vmatprep.subr.mxu0 0.0
    %66 = vmatpush1.msra.mxu0 0.0
    %67 = vmatprep.subr.mxu0 0.0
    %68 = vmatpush1.msra.mxu0 0.0
    %69 = vmatprep.subr.mxu0 0.0
    %70 = vmatpush1.msra.mxu0 0.0
    %71 = vmatprep.subr.mxu0 0.0
    %72 = vmatpush1.msra.mxu0 0.0
    %73 = vmatprep.subr.mxu0 0.0
    %74 = vmatpush1.msra.mxu0 0.0
    %75 = vmatprep.subr.mxu0 0.0
    %76 = vmatpush1.msra.mxu0 0.0
    %77 = vmatprep.subr.mxu0 0.0
    %78 = vmatpush1.msra.mxu0 0.0
    %79 = vmatprep.subr.mxu0 0.0
    %80 = vmatpush1.msra.mxu0 0.0
    %81 = vmatprep.subr.mxu0 0.0
    %82 = vmatpush1.msra.mxu0 0.0
    %83 = vmatprep.subr.mxu0 0.0
    %84 = vmatpush1.msra.mxu0 0.0
    %85 = vmatprep.subr.mxu0 0.0
    %86 = vmatpush1.msra.mxu0 0.0
    %87 = vmatprep.subr.mxu0 0.0
    %88 = vmatpush1.msra.mxu0 0.0
    %89 = vmatprep.subr.mxu0 0.0
    %90 = vmatpush1.msra.mxu0 0.0
    %91 = vmatprep.subr.mxu0 0.0
    %92 = vmatpush1.msra.mxu0 0.0
    %93 = vmatprep.subr.mxu0 0.0
    %94 = vmatpush1.msra.mxu0 0.0
    %95 = vmatprep.subr.mxu0 0.0
    %96 = vmatpush1.msra.mxu0 0.0
    %97 = vmatprep.subr.mxu0 0.0
    %98 = vmatpush1.msra.mxu0 0.0
    %99 = vmatprep.subr.mxu0 0.0
    %100 = vmatpush1.msra.mxu0 0.0
    %101 = vmatprep.subr.mxu0 0.0
    %102 = vmatpush1.msra.mxu0 0.0
    %103 = vmatprep.subr.mxu0 0.0
    %104 = vmatpush1.msra.mxu0 0.0
    %105 = vmatprep.subr.mxu0 0.0
    %106 = vmatpush1.msra.mxu0 0.0
    %107 = vmatprep.mubr.f32.mxu0 0.0
    %108 = vmatmul.mubr.f32.gmra.mrb[0].mxu0 %v38
    %v109 = vpop.f32.mrb[0].mxu0
    %v110 = vadd.f32 0.0, %v109
    %v111 = vpop.f32.mrb[0].mxu0
    %112 = vmatprep.mubr.f32.mxu0 0.0
    %113 = vmatmul.mubr.f32.gmra.mrb[0].mxu0 %v41
    %v114 = vpop.f32.mrb[0].mxu0
    %v115 = vadd.f32 0.0, %v114
    %v116 = vpop.f32.mrb[0].mxu0
    %117 = vdwg.mxu0
    %118 = vmatprep.subr.mxu0 0.0
    %119 = vmatpush1.msra.mxu0 %v110
    %120 = vmatprep.subr.mxu0 0.0
    %121 = vmatpush1.msra.mxu0 %v115
    %122 = vmatprep.subr.mxu0 0.0
    %123 = vmatpush1.msra.mxu0 0.0
    %124 = vmatprep.subr.mxu0 0.0
    %125 = vmatpush1.msra.mxu0 0.0
    %126 = vmatprep.subr.mxu0 0.0
    %127 = vmatpush1.msra.mxu0 0.0
    %128 = vmatprep.subr.mxu0 0.0
    %129 = vmatpush1.msra.mxu0 0.0
    %130 = vmatprep.subr.mxu0 0.0
    %131 = vmatpush1.msra.mxu0 0.0
    %132 = vmatprep.subr.mxu0 0.0
    %133 = vmatpush1.msra.mxu0 0.0
    %134 = vmatprep.subr.mxu0 0.0
    %135 = vmatpush1.msra.mxu0 0.0
    %136 = vmatprep.subr.mxu0 0.0
    %137 = vmatpush1.msra.mxu0 0.0
    %138 = vmatprep.subr.mxu0 0.0
    %139 = vmatpush1.msra.mxu0 0.0
    %140 = vmatprep.subr.mxu0 0.0
    %141 = vmatpush1.msra.mxu0 0.0
    %142 = vmatprep.subr.mxu0 0.0
    %143 = vmatpush1.msra.mxu0 0.0
    %144 = vmatprep.subr.mxu0 0.0
    %145 = vmatpush1.msra.mxu0 0.0
    %146 = vmatprep.subr.mxu0 0.0
    %147 = vmatpush1.msra.mxu0 0.0
    %148 = vmatprep.subr.mxu0 0.0
    %149 = vmatpush1.msra.mxu0 0.0
    %150 = vmatprep.subr.mxu0 0.0
    %151 = vmatpush1.msra.mxu0 0.0
    %152 = vmatprep.subr.mxu0 0.0
    %153 = vmatpush1.msra.mxu0 0.0
    %154 = vmatprep.subr.mxu0 0.0
    %155 = vmatpush1.msra.mxu0 0.0
    %156 = vmatprep.subr.mxu0 0.0
    %157 = vmatpush1.msra.mxu0 0.0
    %158 = vmatprep.subr.mxu0 0.0
    %159 = vmatpush1.msra.mxu0 0.0
    %160 = vmatprep.subr.mxu0 0.0
    %161 = vmatpush1.msra.mxu0 0.0
    %162 = vmatprep.subr.mxu0 0.0
    %163 = vmatpush1.msra.mxu0 0.0
    %164 = vmatprep.subr.mxu0 0.0
    %165 = vmatpush1.msra.mxu0 0.0
    %166 = vmatprep.subr.mxu0 0.0
    %167 = vmatpush1.msra.mxu0 0.0
    %168 = vmatprep.subr.mxu0 0.0
    %169 = vmatpush1.msra.mxu0 0.0
    %170 = vmatprep.subr.mxu0 0.0
    %171 = vmatpush1.msra.mxu0 0.0
    %172 = vmatprep.subr.mxu0 0.0
    %173 = vmatpush1.msra.mxu0 0.0
    %174 = vmatprep.subr.mxu0 0.0
    %175 = vmatpush1.msra.mxu0 0.0
    %176 = vmatprep.subr.mxu0 0.0
    %177 = vmatpush1.msra.mxu0 0.0
    %178 = vmatprep.subr.mxu0 0.0
    %179 = vmatpush1.msra.mxu0 0.0
    %180 = vmatprep.subr.mxu0 0.0
    %181 = vmatpush1.msra.mxu0 0.0
    %182 = vmatprep.mubr.f32.mxu0 0.0
    %183 = vmatmul.mubr.f32.gmra.mrb[0].mxu0 %v38
    %v184 = vpop.f32.mrb[0].mxu0
    %v185 = vadd.f32 0.0, %v184
    %v186 = vpop.f32.mrb[0].mxu0
    %187 = vmatprep.mubr.f32.mxu0 0.0
    %188 = vmatmul.mubr.f32.gmra.mrb[0].mxu0 %v41
    %v189 = vpop.f32.mrb[0].mxu0
    %v190 = vadd.f32 0.0, %v189
    %v191 = vpop.f32.mrb[0].mxu0
    %192 = vdwg.mxu0
    %v193 = vmul.f32 %v185, 2.0
    %v194 = vmul.f32 %v190, 2.0
    %v195 = vsub.f32 %v193, %v32
    %v196 = vsub.f32 %v194, %v33
    %s197 = scalar_lea.vmem [#allocation2], 16
    %v198 = vld [vmem:[%s197] sm:$0xff]
    %v199 = vld [vmem:[%s197 + $0x8] sm:$0xff]
    %v201 = vsel %vm36, %v198, 0
    %v204 = vsel %vm36, %v199, 0
    %206 = vmatprep.subr.mxu0 0.0
    %207 = vmatpush1.msra.mxu0 %v32
    %208 = vmatprep.subr.mxu0 0.0
    %209 = vmatpush1.msra.mxu0 %v33
    %210 = vmatprep.subr.mxu0 0.0
    %211 = vmatpush1.msra.mxu0 0.0
    %212 = vmatprep.subr.mxu0 0.0
    %213 = vmatpush1.msra.mxu0 0.0
    %214 = vmatprep.subr.mxu0 0.0
    %215 = vmatpush1.msra.mxu0 0.0
    %216 = vmatprep.subr.mxu0 0.0
    %217 = vmatpush1.msra.mxu0 0.0
    %218 = vmatprep.subr.mxu0 0.0
    %219 = vmatpush1.msra.mxu0 0.0
    %220 = vmatprep.subr.mxu0 0.0
    %221 = vmatpush1.msra.mxu0 0.0
    %222 = vmatprep.subr.mxu0 0.0
    %223 = vmatpush1.msra.mxu0 0.0
    %224 = vmatprep.subr.mxu0 0.0
    %225 = vmatpush1.msra.mxu0 0.0
    %226 = vmatprep.subr.mxu0 0.0
    %227 = vmatpush1.msra.mxu0 0.0
    %228 = vmatprep.subr.mxu0 0.0
    %229 = vmatpush1.msra.mxu0 0.0
    %230 = vmatprep.subr.mxu0 0.0
    %231 = vmatpush1.msra.mxu0 0.0
    %232 = vmatprep.subr.mxu0 0.0
    %233 = vmatpush1.msra.mxu0 0.0
    %234 = vmatprep.subr.mxu0 0.0
    %235 = vmatpush1.msra.mxu0 0.0
    %236 = vmatprep.subr.mxu0 0.0
    %237 = vmatpush1.msra.mxu0 0.0
    %238 = vmatprep.subr.mxu0 0.0
    %239 = vmatpush1.msra.mxu0 0.0
    %240 = vmatprep.subr.mxu0 0.0
    %241 = vmatpush1.msra.mxu0 0.0
    %242 = vmatprep.subr.mxu0 0.0
    %243 = vmatpush1.msra.mxu0 0.0
    %244 = vmatprep.subr.mxu0 0.0
    %245 = vmatpush1.msra.mxu0 0.0
    %246 = vmatprep.subr.mxu0 0.0
    %247 = vmatpush1.msra.mxu0 0.0
    %248 = vmatprep.subr.mxu0 0.0
    %249 = vmatpush1.msra.mxu0 0.0
    %250 = vmatprep.subr.mxu0 0.0
    %251 = vmatpush1.msra.mxu0 0.0
    %252 = vmatprep.subr.mxu0 0.0
    %253 = vmatpush1.msra.mxu0 0.0
    %254 = vmatprep.subr.mxu0 0.0
    %255 = vmatpush1.msra.mxu0 0.0
    %256 = vmatprep.subr.mxu0 0.0
    %257 = vmatpush1.msra.mxu0 0.0
    %258 = vmatprep.subr.mxu0 0.0
    %259 = vmatpush1.msra.mxu0 0.0
    %260 = vmatprep.subr.mxu0 0.0
    %261 = vmatpush1.msra.mxu0 0.0
    %262 = vmatprep.subr.mxu0 0.0
    %263 = vmatpush1.msra.mxu0 0.0
    %264 = vmatprep.subr.mxu0 0.0
    %265 = vmatpush1.msra.mxu0 0.0
    %266 = vmatprep.subr.mxu0 0.0
    %267 = vmatpush1.msra.mxu0 0.0
    %268 = vmatprep.subr.mxu0 0.0
    %269 = vmatpush1.msra.mxu0 0.0
    %270 = vmatprep.mubr.f32.mxu0 0.0
    %271 = vmatmul.mubr.f32.gmra.mrb[0].mxu0 %v201
    %v272 = vpop.f32.mrb[0].mxu0
    %v273 = vadd.f32 0.0, %v272
    %v274 = vpop.f32.mrb[0].mxu0
    %275 = vmatprep.mubr.f32.mxu0 0.0
    %276 = vmatmul.mubr.f32.gmra.mrb[0].mxu0 %v204
    %v277 = vpop.f32.mrb[0].mxu0
    %v278 = vadd.f32 0.0, %v277
    %v279 = vpop.f32.mrb[0].mxu0
    %280 = vdwg.mxu0
    %281 = vmatprep.subr.mxu0 0.0
    %282 = vmatpush1.msra.mxu0 %v273
    %283 = vmatprep.subr.mxu0 0.0
    %284 = vmatpush1.msra.mxu0 %v278
    %285 = vmatprep.subr.mxu0 0.0
    %286 = vmatpush1.msra.mxu0 0.0
    %287 = vmatprep.subr.mxu0 0.0
    %288 = vmatpush1.msra.mxu0 0.0
    %289 = vmatprep.subr.mxu0 0.0
    %290 = vmatpush1.msra.mxu0 0.0
    %291 = vmatprep.subr.mxu0 0.0
    %292 = vmatpush1.msra.mxu0 0.0
    %293 = vmatprep.subr.mxu0 0.0
    %294 = vmatpush1.msra.mxu0 0.0
    %295 = vmatprep.subr.mxu0 0.0
    %296 = vmatpush1.msra.mxu0 0.0
    %297 = vmatprep.subr.mxu0 0.0
    %298 = vmatpush1.msra.mxu0 0.0
    %299 = vmatprep.subr.mxu0 0.0
    %300 = vmatpush1.msra.mxu0 0.0
    %301 = vmatprep.subr.mxu0 0.0
    %302 = vmatpush1.msra.mxu0 0.0
    %303 = vmatprep.subr.mxu0 0.0
    %304 = vmatpush1.msra.mxu0 0.0
    %305 = vmatprep.subr.mxu0 0.0
    %306 = vmatpush1.msra.mxu0 0.0
    %307 = vmatprep.subr.mxu0 0.0
    %308 = vmatpush1.msra.mxu0 0.0
    %309 = vmatprep.subr.mxu0 0.0
    %310 = vmatpush1.msra.mxu0 0.0
    %311 = vmatprep.subr.mxu0 0.0
    %312 = vmatpush1.msra.mxu0 0.0
    %313 = vmatprep.subr.mxu0 0.0
    %314 = vmatpush1.msra.mxu0 0.0
    %315 = vmatprep.subr.mxu0 0.0
    %316 = vmatpush1.msra.mxu0 0.0
    %317 = vmatprep.subr.mxu0 0.0
    %318 = vmatpush1.msra.mxu0 0.0
    %319 = vmatprep.subr.mxu0 0.0
    %320 = vmatpush1.msra.mxu0 0.0
    %321 = vmatprep.subr.mxu0 0.0
    %322 = vmatpush1.msra.mxu0 0.0
    %323 = vmatprep.subr.mxu0 0.0
    %324 = vmatpush1.msra.mxu0 0.0
    %325 = vmatprep.subr.mxu0 0.0
    %326 = vmatpush1.msra.mxu0 0.0
    %327 = vmatprep.subr.mxu0 0.0
    %328 = vmatpush1.msra.mxu0 0.0
    %329 = vmatprep.subr.mxu0 0.0
    %330 = vmatpush1.msra.mxu0 0.0
    %331 = vmatprep.subr.mxu0 0.0
    %332 = vmatpush1.msra.mxu0 0.0
    %333 = vmatprep.subr.mxu0 0.0
    %334 = vmatpush1.msra.mxu0 0.0
    %335 = vmatprep.subr.mxu0 0.0
    %336 = vmatpush1.msra.mxu0 0.0
    %337 = vmatprep.subr.mxu0 0.0
    %338 = vmatpush1.msra.mxu0 0.0
    %339 = vmatprep.subr.mxu0 0.0
    %340 = vmatpush1.msra.mxu0 0.0
    %341 = vmatprep.subr.mxu0 0.0
    %342 = vmatpush1.msra.mxu0 0.0
    %343 = vmatprep.subr.mxu0 0.0
    %344 = vmatpush1.msra.mxu0 0.0
    %345 = vmatprep.mubr.f32.mxu0 0.0
    %346 = vmatmul.mubr.f32.gmra.mrb[0].mxu0 %v201
    %v347 = vpop.f32.mrb[0].mxu0
    %v348 = vadd.f32 0.0, %v347
    %v349 = vpop.f32.mrb[0].mxu0
    %350 = vmatprep.mubr.f32.mxu0 0.0
    %351 = vmatmul.mubr.f32.gmra.mrb[0].mxu0 %v204
    %v352 = vpop.f32.mrb[0].mxu0
    %v353 = vadd.f32 0.0, %v352
    %v354 = vpop.f32.mrb[0].mxu0
    %355 = vdwg.mxu0
    %v356 = vmul.f32 %v348, 2.0
    %v357 = vmul.f32 %v353, 2.0
    %v358 = vsub.f32 %v356, %v32
    %v359 = vsub.f32 %v357, %v33
    %v360 = vld [vmem:[%s2] sm:$0xf]
    %v361 = vld [vmem:[%s2 + $0xc] sm:$0xf]
    %v362 = vadd.f32 %v360, %v361
    %v363 = vld [vmem:[%s2 + $0x4] sm:$0xf]
    %v364 = vld [vmem:[%s2 + $0x8] sm:$0xf]
    %v365 = vld [vmem:[%s2 + $0x10] sm:$0xf]
    %v366 = vld [vmem:[%s2 + $0x14] sm:$0xf]
    %v368 = vrot.slane %v363, 4
    %v371 = vrot.slane %v365, 4
    %vm373 = vcmask 1043456
    %v374 = vsel %vm373, %v362, %v368
    %v375 = vsel %vm373, %v364, %v371
    %378 = vrot.lane.b32.xlu0 %v110, 4
    %v379 = vpop.permute.xlu0 %378
    %380 = vrot.lane.b32.xlu0 %v115, 4
    %v381 = vpop.permute.xlu0 %380
    %386 = vrot.lane.b32.xlu0 %v195, 8
    %v387 = vpop.permute.xlu0 %386
    %388 = vrot.lane.b32.xlu0 %v196, 8
    %v389 = vpop.permute.xlu0 %388
    %394 = vrot.lane.b32.xlu0 %v273, 12
    %v395 = vpop.permute.xlu0 %394
    %396 = vrot.lane.b32.xlu0 %v278, 12
    %v397 = vpop.permute.xlu0 %396
    %402 = vrot.lane.b32.xlu0 %v358, 16
    %v403 = vpop.permute.xlu0 %402
    %404 = vrot.lane.b32.xlu0 %v359, 16
    %v405 = vpop.permute.xlu0 %404
    %vm408 = vcmask 31744
    %v409 = vsel %vm408, %v32, %v379
    %v410 = vsel %vm408, %v33, %v381
    %vm411 = vcmask 64512
    %v412 = vsel %vm411, %v409, %v387
    %v413 = vsel %vm411, %v410, %v389
    %vm414 = vcmask 97280
    %v415 = vsel %vm414, %v412, %v395
    %v416 = vsel %vm414, %v413, %v397
    %v417 = vsel %vm36, %v415, %v403
    %v418 = vsel %vm36, %v416, %v405
    %421 = vrot.lane.b32.xlu0 %v32, 124
    %v422 = vpop.permute.xlu0 %421
    %423 = vrot.lane.b32.xlu0 %v33, 124
    %v424 = vpop.permute.xlu0 %423
    %427 = vrot.lane.b32.xlu0 %v195, 4
    %v428 = vpop.permute.xlu0 %427
    %429 = vrot.lane.b32.xlu0 %v196, 4
    %v430 = vpop.permute.xlu0 %429
    %433 = vrot.lane.b32.xlu0 %v273, 8
    %v434 = vpop.permute.xlu0 %433
    %435 = vrot.lane.b32.xlu0 %v278, 8
    %v436 = vpop.permute.xlu0 %435
    %439 = vrot.lane.b32.xlu0 %v358, 12
    %v440 = vpop.permute.xlu0 %439
    %441 = vrot.lane.b32.xlu0 %v359, 12
    %v442 = vpop.permute.xlu0 %441
    %v445 = vsel %vm408, %v422, %v110
    %v446 = vsel %vm408, %v424, %v115
    %v447 = vsel %vm411, %v445, %v428
    %v448 = vsel %vm411, %v446, %v430
    %v449 = vsel %vm414, %v447, %v434
    %v450 = vsel %vm414, %v448, %v436
    %v451 = vsel %vm36, %v449, %v440
    %v452 = vsel %vm36, %v450, %v442
    %v453 = vld [vmem:[%s3] sm:$0x1]
    %v455 = vlaneseq
    %v456 = vshrl.u32 %v455, 7
    %v457 = vsub.s32 0, %v456
    %v458 = vrot.slane %v453, %v457
    %vm460 = vcmask 162816
    %v462 = vsel %vm460, %v417, 0
    %v465 = vsel %vm460, %v418, 0
    %v468 = vsel %vm460, %v451, 0
    %v471 = vsel %vm460, %v452, 0
    %v474 = vsel %vm373, %v366, 0
    %476 = vmatprep.subr.mxu0 0.0
    %477 = vmatpush1.msra.mxu0 %v374
    %478 = vmatprep.subr.mxu0 0.0
    %479 = vmatpush1.msra.mxu0 %v375
    %480 = vmatprep.subr.mxu0 0.0
    %481 = vmatpush1.msra.mxu0 %v474
    %482 = vmatprep.subr.mxu0 0.0
    %483 = vmatpush1.msra.mxu0 0.0
    %484 = vmatprep.subr.mxu0 0.0
    %485 = vmatpush1.msra.mxu0 0.0
    %486 = vmatprep.subr.mxu0 0.0
    %487 = vmatpush1.msra.mxu0 0.0
    %488 = vmatprep.subr.mxu0 0.0
    %489 = vmatpush1.msra.mxu0 0.0
    %490 = vmatprep.subr.mxu0 0.0
    %491 = vmatpush1.msra.mxu0 0.0
    %492 = vmatprep.subr.mxu0 0.0
    %493 = vmatpush1.msra.mxu0 0.0
    %494 = vmatprep.subr.mxu0 0.0
    %495 = vmatpush1.msra.mxu0 0.0
    %496 = vmatprep.subr.mxu0 0.0
    %497 = vmatpush1.msra.mxu0 0.0
    %498 = vmatprep.subr.mxu0 0.0
    %499 = vmatpush1.msra.mxu0 0.0
    %500 = vmatprep.subr.mxu0 0.0
    %501 = vmatpush1.msra.mxu0 0.0
    %502 = vmatprep.subr.mxu0 0.0
    %503 = vmatpush1.msra.mxu0 0.0
    %504 = vmatprep.subr.mxu0 0.0
    %505 = vmatpush1.msra.mxu0 0.0
    %506 = vmatprep.subr.mxu0 0.0
    %507 = vmatpush1.msra.mxu0 0.0
    %508 = vmatprep.subr.mxu0 0.0
    %509 = vmatpush1.msra.mxu0 0.0
    %510 = vmatprep.subr.mxu0 0.0
    %511 = vmatpush1.msra.mxu0 0.0
    %512 = vmatprep.subr.mxu0 0.0
    %513 = vmatpush1.msra.mxu0 0.0
    %514 = vmatprep.subr.mxu0 0.0
    %515 = vmatpush1.msra.mxu0 0.0
    %516 = vmatprep.subr.mxu0 0.0
    %517 = vmatpush1.msra.mxu0 0.0
    %518 = vmatprep.subr.mxu0 0.0
    %519 = vmatpush1.msra.mxu0 0.0
    %520 = vmatprep.subr.mxu0 0.0
    %521 = vmatpush1.msra.mxu0 0.0
    %522 = vmatprep.subr.mxu0 0.0
    %523 = vmatpush1.msra.mxu0 0.0
    %524 = vmatprep.subr.mxu0 0.0
    %525 = vmatpush1.msra.mxu0 0.0
    %526 = vmatprep.subr.mxu0 0.0
    %527 = vmatpush1.msra.mxu0 0.0
    %528 = vmatprep.subr.mxu0 0.0
    %529 = vmatpush1.msra.mxu0 0.0
    %530 = vmatprep.subr.mxu0 0.0
    %531 = vmatpush1.msra.mxu0 0.0
    %532 = vmatprep.subr.mxu0 0.0
    %533 = vmatpush1.msra.mxu0 0.0
    %534 = vmatprep.subr.mxu0 0.0
    %535 = vmatpush1.msra.mxu0 0.0
    %536 = vmatprep.subr.mxu0 0.0
    %537 = vmatpush1.msra.mxu0 0.0
    %538 = vmatprep.subr.mxu0 0.0
    %539 = vmatpush1.msra.mxu0 0.0
    %540 = vmatprep.mubr.f32.mxu0 0.0
    %541 = vmatmul.mubr.f32.gmra.mrb[0].mxu0 %v462
    %v542 = vpop.f32.mrb[0].mxu0
    %v543 = vadd.f32 %v458, %v542
    %v544 = vpop.f32.mrb[0].mxu0
    %545 = vmatprep.mubr.f32.mxu0 0.0
    %546 = vmatmul.mubr.f32.gmra.mrb[0].mxu0 %v465
    %v547 = vpop.f32.mrb[0].mxu0
    %v548 = vadd.f32 %v458, %v547
    %v549 = vpop.f32.mrb[0].mxu0
    %550 = vmatprep.mubr.f32.mxu0 0.0
    %551 = vmatmul.mubr.f32.gmra.mrb[0].mxu0 %v468
    %v552 = vpop.f32.mrb[0].mxu0
    %v553 = vadd.f32 %v458, %v552
    %v554 = vpop.f32.mrb[0].mxu0
    %555 = vmatprep.mubr.f32.mxu0 0.0
    %556 = vmatmul.mubr.f32.gmra.mrb[0].mxu0 %v471
    %v557 = vpop.f32.mrb[0].mxu0
    %v558 = vadd.f32 %v458, %v557
    %v559 = vpop.f32.mrb[0].mxu0
    %560 = vdwg.mxu0
    %vm561 = vcmask 261120
    %562 = vst.msk [vmem:[#allocation5] sm:$0xff] %vm561, %v543
    %563 = vst.msk [vmem:[#allocation5 + $0x8] sm:$0xff] %vm561, %v548
    %564 = vst.msk [vmem:[#allocation5 + $0x10] sm:$0xff] %vm561, %v553
    %565 = vst.msk [vmem:[#allocation5 + $0x18] sm:$0xff] %vm561, %v558
    // Predicated region
    $region22: #{tpu_custom_call.1} parent=1 // pred_check
      _
    $region23: #{tpu_custom_call.1} parent=1 // pred_check_branch
      %567 = sbr.rel (0) target = $region25
    $region24: #{tpu_custom_call.1} parent=1 // pred_region
      %s569 = ssub.s32 512, 512
      %570 = vsyncadd [#allocation4], %s569
      %s571 = sshll.u32 [#allocation5], 4
      %s572 = int_to_ptr.vmem [resolvable:$true] %s571
      %577 = dma.vmem_to_hbm [thread:$0]  %s572, 512, %s4, [#allocation4], 128, 128, 8
    $region25: #{tpu_custom_call.1} parent=1 // pred_fallthru
      _
    // Predicated region
    $region26: #{tpu_custom_call.1} parent=1 // pred_check
      _
    $region27: #{tpu_custom_call.1} parent=1 // pred_check_branch
      %579 = sbr.rel (0) target = $region29
    $region28: #{tpu_custom_call.1} parent=1 // pred_region
      %580 = dma.done [#allocation4], 512
    $region29: #{tpu_custom_call.1} parent=1 // pred_fallthru
      _
    %581 = vsyncpa [#allocation3], 1
    %582 = vsyncpa [#allocation4], 1

</llo_original>
